<compile_context>
chip_gen: v5e
topology: v5e:2x2
jax: 0.10.0
libtpu: 0.0.40
codegen_flags: <defaults>
</compile_context>

<pallas_src>
import jax
import jax.numpy as jnp
from jax import lax
from jax.experimental import pallas as pl
from jax.experimental.pallas import tpu as pltpu

INPUT_DIM = 7      # static input dim (module default)
LATENT = 128       # latent_dim (small, lane-aligned)
MAX_SEQ = 16       # max_seq_len (learnable pos-emb length)
SEQ_LEN = 8        # seq_len used in the example (<= MAX_SEQ -> learnable emb)
K = 3              # causal conv kernel size
BATCH = 2

_HI = lax.Precision.HIGHEST
_WALIGN = 16       # bf16 sublane tile (packed dtype)
_FALIGN = 8        # f32 sublane tile


def _round_up(n, m):
    return (n + m - 1) // m * m


def sinusoidal_pos_encoding(seq_len, model_dim):
    # seq_len > max_seq_len branch of the module (computed host-side, like torch).
    pos = jnp.arange(seq_len, dtype=jnp.float32)[:, None]
    i = jnp.arange(model_dim, dtype=jnp.float32)[None, :]
    angle_rates = 1.0 / jnp.power(10000.0, 2.0 * jnp.floor(i / 2.0) / model_dim)
    ang = pos * angle_rates
    even = (jnp.arange(model_dim) % 2 == 0)[None, :]
    return jnp.where(even, jnp.sin(ang), jnp.cos(ang))


# -----------------------------------------------------------------------------
# Host-side packing (done once per model): 12 tiny operands -> 2 aligned slabs.
# -----------------------------------------------------------------------------
def pack_params(params, seq_len, batch):
    (w1, b1, w2, b2, pos_emb, wc1, bc1, wc2, bc2, wc3, bc3) = params
    C = w2.shape[1]
    L = seq_len
    M = batch * L

    if seq_len <= pos_emb.shape[0]:
        pos = pos_emb[:seq_len]                      # learnable-embedding branch
    else:
        pos = sinusoidal_pos_encoding(seq_len, C)

    # --- bf16 weight slab: every MXU RHS; conv taps flattened to (K*C, C) so
    #     each conv layer is a single K*C-deep contraction. ---
    w1_rows = _round_up(INPUT_DIM, _WALIGN)
    w1p = jnp.zeros((w1_rows, C), jnp.float32).at[:INPUT_DIM].set(w1)
    wc1_flat = wc1.reshape(K * C, C)                 # rows = [w[0]; w[1]; w[2]]
    wc2_flat = wc2.reshape(K * C, C)
    wslab = jnp.concatenate([w1p, w2, wc1_flat, wc2_flat],
                            axis=0).astype(jnp.bfloat16)
    w_off = {"w1": 0, "w2": w1_rows,
             "wc1": w1_rows + C, "wc2": w1_rows + C + K * C}

    # --- f32 slab: biases, bc3, wc3 tap rows, pos rows, block-causal masks ---
    header = jnp.concatenate(
        [b1, b2, bc1, bc2, jnp.broadcast_to(bc3, (1, C)), wc3[:, :, 0]], axis=0)
    hdr_rows = _round_up(header.shape[0], _FALIGN)
    header = jnp.zeros((hdr_rows, C), jnp.float32).at[:5 + K].set(header)

    pos_rows = _round_up(L, _FALIGN)
    pos_blk = jnp.zeros((pos_rows, C), jnp.float32).at[:L].set(pos)

    mask_rows = _round_up(M, _FALIGN)
    t_in_blk = jnp.arange(mask_rows) % L             # per-row time index within a block
    mask_blks = [
        jnp.broadcast_to((t_in_blk >= s).astype(jnp.float32)[:, None],
                         (mask_rows, C))
        for s in range(1, K)
    ]
    fslab = jnp.concatenate([header, pos_blk] + mask_blks, axis=0)
    f_off = {"b1": 0, "b2": 1, "bc1": 2, "bc2": 3, "bc3": 4, "wc3": 5,
             "pos": hdr_rows, "mask": hdr_rows + pos_rows}

    dims = {"B": batch, "L": L, "C": C,
            "w1_rows": w1_rows, "mask_rows": mask_rows}
    return {"wslab": wslab, "fslab": fslab,
            "w_off": w_off, "f_off": f_off, "dims": dims}


# -----------------------------------------------------------------------------
# Kernel
# -----------------------------------------------------------------------------
def _make_kernel(packed):
    w_off, f_off, dims = packed["w_off"], packed["f_off"], packed["dims"]
    B, L, C = dims["B"], dims["L"], dims["C"]
    M, KC = B * L, K * C
    w1_rows, mask_rows = dims["w1_rows"], dims["mask_rows"]

    def kernel(static_ref, wslab_ref, fslab_ref, out_ref):
        # --- static, aligned slab views (3 input DMAs total) ---
        w1 = wslab_ref[w_off["w1"]:w_off["w1"] + w1_rows, :]
        w2 = wslab_ref[w_off["w2"]:w_off["w2"] + C, :]
        wc1 = wslab_ref[w_off["wc1"]:w_off["wc1"] + KC, :]
        wc2 = wslab_ref[w_off["wc2"]:w_off["wc2"] + KC, :]
        b1 = fslab_ref[f_off["b1"]:f_off["b1"] + 1, :]
        b2 = fslab_ref[f_off["b2"]:f_off["b2"] + 1, :]
        bc1 = fslab_ref[f_off["bc1"]:f_off["bc1"] + 1, :]
        bc2 = fslab_ref[f_off["bc2"]:f_off["bc2"] + 1, :]
        bc3 = fslab_ref[f_off["bc3"]:f_off["bc3"] + 1, 0:1]               # (1,1)
        pos = fslab_ref[f_off["pos"]:f_off["pos"] + L, :]                 # (L,C)
        row_mask = [
            fslab_ref[f_off["mask"] + (s - 1) * mask_rows:
                      f_off["mask"] + (s - 1) * mask_rows + M, :]
            for s in range(1, K)
        ]                                                                 # (M,C) 0/1

        def mm(a, w):
            # bf16 MXU operands, f32 accumulate (review: drop HIGHEST f32 dots).
            return jnp.dot(a.astype(jnp.bfloat16), w,
                           preferred_element_type=jnp.float32)

        # ---- cond MLP on the whole batch: (B,16)@(16,C) -> ReLU -> (B,C)@(C,C) ----
        h = jnp.maximum(mm(static_ref[...], w1) + b1, 0.0)                # (B,C)
        cond = mm(h, w2) + b2                                             # (B,C)

        # ---- x[b*L+t] = cond[b] + pos[t]: sublane broadcast-add per batch
        #      block + tile-aligned sublane concat (no replication matmul). ----
        x = jnp.concatenate([cond[b:b + 1, :] + pos for b in range(B)], axis=0)

        # ---- block-causal shift: XLU sublane roll * precomputed 0/1 row mask ----
        def shifted(z, s):
            if s == 0:
                return z
            return pltpu.roll(z, shift=s, axis=0) * row_mask[s - 1]

        # ---- causal conv: K taps lane-concatenated -> one (M,K*C)@(K*C,C) dot ----
        def conv_fused(z, wflat, bias):
            z_cat = jnp.concatenate([shifted(z, K - 1 - k) for k in range(K)],
                                    axis=1)                               # (M,K*C)
            return mm(z_cat, wflat) + bias

        h1 = jnp.maximum(conv_fused(x, wc1, bc1), 0.0)                    # (M,C)
        h2 = jnp.maximum(conv_fused(h1, wc2, bc2), 0.0)                   # (M,C)

        # ---- final Cout=1 conv on the VPU: accumulate the taps elementwise,
        #      then a single XLU lane reduction (no degenerate 1-lane MXU dot). ----
        p = jnp.zeros((M, C), jnp.float32)
        for k in range(K):
            wrow = fslab_ref[f_off["wc3"] + k:f_off["wc3"] + k + 1, :]    # (1,C)
            p = p + shifted(h2, K - 1 - k) * wrow
        out_ref[...] = jnp.sum(p, axis=-1, keepdims=True) + bc3           # (M,1)

    return kernel


def s2s_forward(static_input, packed):
    dims = packed["dims"]
    B, L = dims["B"], dims["L"]
    M = B * L
    # zero-pad the static feature dim to the slab's aligned w1 row count
    static_pad = jnp.zeros((B, dims["w1_rows"]), jnp.float32)
    static_pad = static_pad.at[:, :INPUT_DIM].set(static_input)

    vmem = pl.BlockSpec(memory_space=pltpu.MemorySpace.VMEM)
    out = pl.pallas_call(
        _make_kernel(packed),
        out_shape=jax.ShapeDtypeStruct((M, 1), jnp.float32),
        in_specs=[vmem, vmem, vmem],
        out_specs=vmem,
    )(static_pad, packed["wslab"], packed["fslab"])
    # (B*L,1) -> (B,L) is a free row-major reshape outside the kernel (replaces
    # the old gather matmul / in-kernel sublane->lane relayout).
    return out.reshape(B, L)


# -----------------------------------------------------------------------------
# Params + pure-JAX reference (mirrors the PyTorch forward)
# -----------------------------------------------------------------------------
def init_params(key):
    keys = jax.random.split(key, 11)

    def lin(kw, kb, fan_in, fan_out):
        bound = 1.0 / jnp.sqrt(fan_in)
        w = jax.random.uniform(kw, (fan_in, fan_out), jnp.float32, -bound, bound)
        b = jax.random.uniform(kb, (1, fan_out), jnp.float32, -bound, bound)
        return w, b

    def conv(kw, kb, cin, cout):
        bound = 1.0 / jnp.sqrt(cin * K)
        # stored as (K, Cin, Cout) == torch weight (Cout, Cin, K) transposed
        w = jax.random.uniform(kw, (K, cin, cout), jnp.float32, -bound, bound)
        b = jax.random.uniform(kb, (1, cout), jnp.float32, -bound, bound)
        return w, b

    w1, b1 = lin(keys[0], keys[1], INPUT_DIM, LATENT)
    w2, b2 = lin(keys[2], keys[3], LATENT, LATENT)
    pos_emb = jax.random.normal(keys[4], (MAX_SEQ, LATENT), jnp.float32)
    wc1, bc1 = conv(keys[5], keys[6], LATENT, LATENT)
    wc2, bc2 = conv(keys[7], keys[8], LATENT, LATENT)
    wc3, bc3 = conv(keys[9], keys[10], LATENT, 1)
    return (w1, b1, w2, b2, pos_emb, wc1, bc1, wc2, bc2, wc3, bc3)


def reference(static_input, params, seq_len):
    # Pure-JAX, all-f32 HIGHEST-precision mirror of the PyTorch forward.
    (w1, b1, w2, b2, pos_emb, wc1, bc1, wc2, bc2, wc3, bc3) = params
    h = jnp.maximum(jnp.dot(static_input, w1, precision=_HI) + b1, 0.0)
    cond = jnp.dot(h, w2, precision=_HI) + b2                      # (B, C)
    if seq_len <= pos_emb.shape[0]:
        pos = pos_emb[:seq_len]
    else:
        pos = sinusoidal_pos_encoding(seq_len, w2.shape[1])
    x = cond[:, None, :] + pos[None, :, :]                         # (B, L, C)

    def cconv(x, w, b):
        xp = jnp.pad(x, ((0, 0), (K - 1, 0), (0, 0)))
        acc = jnp.zeros((x.shape[0], seq_len, w.shape[2]), jnp.float32)
        for k in range(K):
            acc = acc + jnp.einsum('blc,cd->bld', xp[:, k:k + seq_len, :], w[k],
                                   precision=_HI)
        return acc + b

    h1 = jnp.maximum(cconv(x, wc1, bc1), 0.0)
    h2 = jnp.maximum(cconv(h1, wc2, bc2), 0.0)
    out = cconv(h2, wc3, bc3)                                      # (B, L, 1)
    return out[..., 0]


if __name__ == "__main__":
    key = jax.random.PRNGKey(0)
    pkey, xkey = jax.random.split(key)
    params = init_params(pkey)
    static_input = jax.random.normal(xkey, (BATCH, INPUT_DIM), jnp.float32)

    packed = pack_params(params, SEQ_LEN, BATCH)     # host-side, once per model
    out = s2s_forward(static_input, packed)
    out = jax.block_until_ready(out)
    assert out.shape == (BATCH, SEQ_LEN), out.shape

    ref = reference(static_input, params, SEQ_LEN)
    max_err = float(jnp.max(jnp.abs(out - ref)))
    # Kernel uses bf16 MXU operands (per perf review) vs. an all-f32 HIGHEST
    # reference -> expected max error ~1e-3; 2e-2 still catches any layout /
    # shift / weight-packing bug (those produce O(0.1-1) errors).
    assert max_err < 2e-2, f"kernel/reference mismatch: {max_err}"

    print("KERNEL_OK")
</pallas_src>

<mosaic_0001>
module attributes {stable_mosaic.version = 11 : i64} {
  func.func @kernel(%arg0: memref<2x16xf32, #tpu.memory_space<vmem>>, %arg1: memref<912x128xbf16, #tpu.memory_space<vmem>>, %arg2: memref<48x128xf32, #tpu.memory_space<vmem>>, %arg3: memref<16x1xf32, #tpu.memory_space<vmem>>) attributes {dimension_semantics = [], scalar_prefetch = 0 : i64, scratch_operands = 0 : i64, tpu.core_type = #tpu.core_type<tc>} {
    %c0 = arith.constant 0 : index
    %c0_0 = arith.constant 0 : index
    %0 = vector.load %arg1[%c0, %c0_0] : memref<912x128xbf16, #tpu.memory_space<vmem>>, vector<16x128xbf16>
    %c16 = arith.constant 16 : index
    %c0_1 = arith.constant 0 : index
    %1 = vector.load %arg1[%c16, %c0_1] : memref<912x128xbf16, #tpu.memory_space<vmem>>, vector<128x128xbf16>
    %c144 = arith.constant 144 : index
    %c0_2 = arith.constant 0 : index
    %2 = vector.load %arg1[%c144, %c0_2] : memref<912x128xbf16, #tpu.memory_space<vmem>>, vector<384x128xbf16>
    %c528 = arith.constant 528 : index
    %c0_3 = arith.constant 0 : index
    %3 = vector.load %arg1[%c528, %c0_3] : memref<912x128xbf16, #tpu.memory_space<vmem>>, vector<384x128xbf16>
    %c0_4 = arith.constant 0 : index
    %c0_5 = arith.constant 0 : index
    %4 = vector.load %arg2[%c0_4, %c0_5] : memref<48x128xf32, #tpu.memory_space<vmem>>, vector<1x128xf32>
    %c1 = arith.constant 1 : index
    %c0_6 = arith.constant 0 : index
    %5 = vector.load %arg2[%c1, %c0_6] : memref<48x128xf32, #tpu.memory_space<vmem>>, vector<1x128xf32>
    %c2 = arith.constant 2 : index
    %c0_7 = arith.constant 0 : index
    %6 = vector.load %arg2[%c2, %c0_7] : memref<48x128xf32, #tpu.memory_space<vmem>>, vector<1x128xf32>
    %c3 = arith.constant 3 : index
    %c0_8 = arith.constant 0 : index
    %7 = vector.load %arg2[%c3, %c0_8] : memref<48x128xf32, #tpu.memory_space<vmem>>, vector<1x128xf32>
    %c4 = arith.constant 4 : index
    %c0_9 = arith.constant 0 : index
    %8 = vector.load %arg2[%c4, %c0_9] : memref<48x128xf32, #tpu.memory_space<vmem>>, vector<1x1xf32>
    %c8 = arith.constant 8 : index
    %c0_10 = arith.constant 0 : index
    %9 = vector.load %arg2[%c8, %c0_10] : memref<48x128xf32, #tpu.memory_space<vmem>>, vector<8x128xf32>
    %c16_11 = arith.constant 16 : index
    %c0_12 = arith.constant 0 : index
    %10 = vector.load %arg2[%c16_11, %c0_12] : memref<48x128xf32, #tpu.memory_space<vmem>>, vector<16x128xf32>
    %c32 = arith.constant 32 : index
    %c0_13 = arith.constant 0 : index
    %11 = vector.load %arg2[%c32, %c0_13] : memref<48x128xf32, #tpu.memory_space<vmem>>, vector<16x128xf32>
    %c0_14 = arith.constant 0 : index
    %c0_15 = arith.constant 0 : index
    %12 = vector.load %arg0[%c0_14, %c0_15] : memref<2x16xf32, #tpu.memory_space<vmem>>, vector<2x16xf32>
    %13 = arith.truncf %12 : vector<2x16xf32> to vector<2x16xbf16>
    %cst = arith.constant dense<0.000000e+00> : vector<2x128xf32>
    %14 = tpu.matmul %13, %0, %cst {dimension_numbers = #tpu.dot_dimension_numbers<[1], [0], [0], [1], [0, 0, 1, 1], [], []>} : vector<2x16xbf16>, vector<16x128xbf16>, vector<2x128xf32> -> vector<2x128xf32>
    %15 = vector.broadcast %4 : vector<1x128xf32> to vector<2x128xf32>
    %16 = arith.addf %14, %15 : vector<2x128xf32>
    %cst_16 = arith.constant 0.000000e+00 : f32
    %17 = vector.broadcast %cst_16 : f32 to vector<2x128xf32>
    %18 = arith.maximumf %16, %17 : vector<2x128xf32>
    %19 = arith.truncf %18 : vector<2x128xf32> to vector<2x128xbf16>
    %cst_17 = arith.constant dense<0.000000e+00> : vector<2x128xf32>
    %20 = tpu.matmul %19, %1, %cst_17 {dimension_numbers = #tpu.dot_dimension_numbers<[1], [0], [0], [1], [0, 0, 1, 1], [], []>} : vector<2x128xbf16>, vector<128x128xbf16>, vector<2x128xf32> -> vector<2x128xf32>
    %21 = vector.broadcast %5 : vector<1x128xf32> to vector<2x128xf32>
    %22 = arith.addf %20, %21 : vector<2x128xf32>
    %23 = vector.extract_strided_slice %22 {offsets = [0, 0], sizes = [1, 128], strides = [1, 1]} : vector<2x128xf32> to vector<1x128xf32>
    %24 = vector.broadcast %23 : vector<1x128xf32> to vector<8x128xf32>
    %25 = arith.addf %24, %9 : vector<8x128xf32>
    %26 = vector.extract_strided_slice %22 {offsets = [1, 0], sizes = [1, 128], strides = [1, 1]} : vector<2x128xf32> to vector<1x128xf32>
    %27 = vector.broadcast %26 : vector<1x128xf32> to vector<8x128xf32>
    %28 = arith.addf %27, %9 : vector<8x128xf32>
    %29 = tpu.concatenate %25, %28 in 0 : vector<8x128xf32>, vector<8x128xf32> -> vector<16x128xf32>
    %c2_i32 = arith.constant 2 : i32
    %30 = tpu.dynamic_rotate %29 by %c2_i32 dim 0 : vector<16x128xf32>, i32 -> vector<16x128xf32>
    %31 = arith.mulf %30, %11 : vector<16x128xf32>
    %c1_i32 = arith.constant 1 : i32
    %32 = tpu.dynamic_rotate %29 by %c1_i32 dim 0 : vector<16x128xf32>, i32 -> vector<16x128xf32>
    %33 = arith.mulf %32, %10 : vector<16x128xf32>
    %34 = tpu.concatenate %31, %33, %29 in 1 : vector<16x128xf32>, vector<16x128xf32>, vector<16x128xf32> -> vector<16x384xf32>
    %35 = arith.truncf %34 : vector<16x384xf32> to vector<16x384xbf16>
    %cst_18 = arith.constant dense<0.000000e+00> : vector<16x128xf32>
    %36 = tpu.matmul %35, %2, %cst_18 {dimension_numbers = #tpu.dot_dimension_numbers<[1], [0], [0], [1], [0, 0, 1, 1], [], []>} : vector<16x384xbf16>, vector<384x128xbf16>, vector<16x128xf32> -> vector<16x128xf32>
    %37 = vector.broadcast %6 : vector<1x128xf32> to vector<16x128xf32>
    %38 = arith.addf %36, %37 : vector<16x128xf32>
    %cst_19 = arith.constant 0.000000e+00 : f32
    %39 = vector.broadcast %cst_19 : f32 to vector<16x128xf32>
    %40 = arith.maximumf %38, %39 : vector<16x128xf32>
    %c2_i32_20 = arith.constant 2 : i32
    %41 = tpu.dynamic_rotate %40 by %c2_i32_20 dim 0 : vector<16x128xf32>, i32 -> vector<16x128xf32>
    %42 = arith.mulf %41, %11 : vector<16x128xf32>
    %c1_i32_21 = arith.constant 1 : i32
    %43 = tpu.dynamic_rotate %40 by %c1_i32_21 dim 0 : vector<16x128xf32>, i32 -> vector<16x128xf32>
    %44 = arith.mulf %43, %10 : vector<16x128xf32>
    %45 = tpu.concatenate %42, %44, %40 in 1 : vector<16x128xf32>, vector<16x128xf32>, vector<16x128xf32> -> vector<16x384xf32>
    %46 = arith.truncf %45 : vector<16x384xf32> to vector<16x384xbf16>
    %cst_22 = arith.constant dense<0.000000e+00> : vector<16x128xf32>
    %47 = tpu.matmul %46, %3, %cst_22 {dimension_numbers = #tpu.dot_dimension_numbers<[1], [0], [0], [1], [0, 0, 1, 1], [], []>} : vector<16x384xbf16>, vector<384x128xbf16>, vector<16x128xf32> -> vector<16x128xf32>
    %48 = vector.broadcast %7 : vector<1x128xf32> to vector<16x128xf32>
    %49 = arith.addf %47, %48 : vector<16x128xf32>
    %cst_23 = arith.constant 0.000000e+00 : f32
    %50 = vector.broadcast %cst_23 : f32 to vector<16x128xf32>
    %51 = arith.maximumf %49, %50 : vector<16x128xf32>
    %cst_24 = arith.constant 0.000000e+00 : f32
    %52 = vector.broadcast %cst_24 : f32 to vector<16x128xf32>
    %c5 = arith.constant 5 : index
    %c0_25 = arith.constant 0 : index
    %53 = vector.load %arg2[%c5, %c0_25] : memref<48x128xf32, #tpu.memory_space<vmem>>, vector<1x128xf32>
    %c2_i32_26 = arith.constant 2 : i32
    %54 = tpu.dynamic_rotate %51 by %c2_i32_26 dim 0 : vector<16x128xf32>, i32 -> vector<16x128xf32>
    %55 = arith.mulf %54, %11 : vector<16x128xf32>
    %56 = vector.broadcast %53 : vector<1x128xf32> to vector<16x128xf32>
    %57 = arith.mulf %55, %56 : vector<16x128xf32>
    %58 = arith.addf %52, %57 : vector<16x128xf32>
    %c6 = arith.constant 6 : index
    %c0_27 = arith.constant 0 : index
    %59 = vector.load %arg2[%c6, %c0_27] : memref<48x128xf32, #tpu.memory_space<vmem>>, vector<1x128xf32>
    %c1_i32_28 = arith.constant 1 : i32
    %60 = tpu.dynamic_rotate %51 by %c1_i32_28 dim 0 : vector<16x128xf32>, i32 -> vector<16x128xf32>
    %61 = arith.mulf %60, %10 : vector<16x128xf32>
    %62 = vector.broadcast %59 : vector<1x128xf32> to vector<16x128xf32>
    %63 = arith.mulf %61, %62 : vector<16x128xf32>
    %64 = arith.addf %58, %63 : vector<16x128xf32>
    %c7 = arith.constant 7 : index
    %c0_29 = arith.constant 0 : index
    %65 = vector.load %arg2[%c7, %c0_29] : memref<48x128xf32, #tpu.memory_space<vmem>>, vector<1x128xf32>
    %66 = vector.broadcast %65 : vector<1x128xf32> to vector<16x128xf32>
    %67 = arith.mulf %51, %66 : vector<16x128xf32>
    %68 = arith.addf %64, %67 : vector<16x128xf32>
    %cst_30 = arith.constant dense<0.000000e+00> : vector<16xf32>
    %69 = vector.multi_reduction <add>, %68, %cst_30 [1] : vector<16x128xf32> to vector<16xf32>
    %70 = vector.shape_cast %69 : vector<16xf32> to vector<16x1xf32>
    %71 = vector.broadcast %8 : vector<1x1xf32> to vector<16x1xf32>
    %72 = arith.addf %70, %71 : vector<16x1xf32>
    %c0_31 = arith.constant 0 : index
    %c0_32 = arith.constant 0 : index
    %73 = vector.load %arg3[%c0_31, %c0_32] : memref<16x1xf32, #tpu.memory_space<vmem>>, vector<16x1xf32>
    tpu.vector_store %arg3[%c0_31, %c0_32], %72 {strides = array<i32>} : memref<16x1xf32, #tpu.memory_space<vmem>>, vector<16x1xf32>,
    return
  }
}

</mosaic_0001>

<llo_original>
// kernel: tpu_custom_call.1
$region0: #{tpu_custom_call.1}
  #allocation0 [shape = 'u32[]', space=smem, size = 0x4, offset = 0x4, fixed_abs, tag = 'smem constant byte address 0x4 - core index']
  #allocation1 [shape = 'u32[72,128]{1,0:T(1,128)}', space=vmem, size = 0x9000, scoped, tag = 'internal scratch']
  %s0 = inlined_call_operand.hbm [shape: f32[2,16], index: 0, kind: input, shape index: {}]
  %s1 = inlined_call_operand.hbm [shape: bf16[912,128], index: 1, kind: input, shape index: {}]
  %s2 = inlined_call_operand.hbm [shape: f32[48,128], index: 2, kind: input, shape index: {}]
  %s3 = inlined_call_operand.vmem [shape: f32[16,1], index: 3, kind: output, shape index: {}]
  %s4 = sld [smem:[#allocation0]]
  $region34: #{tpu_custom_call.1} parent=0
    _
  %s6 = ssub.s32 1, %s4
  %s7 = scalar_select 0, %s6, %s4
  $region1: #{tpu_custom_call.1} parent=0
    #allocation2 [shape = 'u8[1024]{0}', space=vmem, size = 0x400, scoped, tag = 'input window, operand 0, single buffered']
    #allocation3 [shape = 's32[1]{0}', space=sflag, size = 0x4, scoped, tag = 'scoped memory for tpu_custom_call.1']
    #allocation4 [shape = 'u8[233472]{0}', space=vmem, size = 0x39000, scoped, tag = 'input window, operand 1, single buffered']
    #allocation5 [shape = 's32[1]{0}', space=sflag, size = 0x4, scoped, tag = 'scoped memory for tpu_custom_call.1']
    #allocation6 [shape = 'u8[24576]{0}', space=vmem, size = 0x6000, scoped, tag = 'input window, operand 2, single buffered']
    %8 = vsyncpa [#allocation3], 0
    %9 = vsyncpa [#allocation5], 0
    // Predicated region
    $region2: #{tpu_custom_call.1} parent=1 // pred_check
      _
    $region3: #{tpu_custom_call.1} parent=1 // pred_check_branch
      %11 = sbr.rel (0) target = $region5
    $region4: #{tpu_custom_call.1} parent=1 // pred_region
      %13 = vsyncadd [#allocation3], 0
      %s15 = sshll.u32 %s0, 4
      %s16 = int_to_ptr.hbm [resolvable:$true] %s15
      %s17 = sshll.u32 [#allocation2], 4
      %s18 = int_to_ptr.vmem [resolvable:$true] %s17
      %20 = dma.hbm_to_vmem [thread:$0]  %s16, 32, %s18, [#allocation3]
    $region5: #{tpu_custom_call.1} parent=1 // pred_fallthru
      _
    // Predicated region
    $region6: #{tpu_custom_call.1} parent=1 // pred_check
      _
    $region7: #{tpu_custom_call.1} parent=1 // pred_check_branch
      %22 = sbr.rel (0) target = $region9
    $region8: #{tpu_custom_call.1} parent=1 // pred_region
      %24 = vsyncadd [#allocation5], 0
      %s25 = sshll.u32 %s1, 4
      %s26 = int_to_ptr.hbm [resolvable:$true] %s25
      %s27 = sshll.u32 [#allocation4], 4
      %s28 = int_to_ptr.vmem [resolvable:$true] %s27
      %33 = dma.hbm_to_vmem [thread:$0]  %s26, 7296, %s28, [#allocation5], 64, 64, 4
    $region9: #{tpu_custom_call.1} parent=1 // pred_fallthru
      _
    // Predicated region
    $region10: #{tpu_custom_call.1} parent=1 // pred_check
      _
    $region11: #{tpu_custom_call.1} parent=1 // pred_check_branch
      %35 = sbr.rel (0) target = $region13
    $region12: #{tpu_custom_call.1} parent=1 // pred_region
      %37 = vsyncadd [#allocation5], 0
      %s38 = sshll.u32 %s2, 4
      %s39 = int_to_ptr.hbm [resolvable:$true] %s38
      %s40 = sshll.u32 [#allocation6], 4
      %s41 = int_to_ptr.vmem [resolvable:$true] %s40
      %46 = dma.hbm_to_vmem [thread:$0]  %s39, 768, %s41, [#allocation5], 128, 128, 8
    $region13: #{tpu_custom_call.1} parent=1 // pred_fallthru
      _
    // Predicated region
    $region14: #{tpu_custom_call.1} parent=1 // pred_check
      _
    $region15: #{tpu_custom_call.1} parent=1 // pred_check_branch
      %48 = sbr.rel (0) target = $region17
    $region16: #{tpu_custom_call.1} parent=1 // pred_region
      %50 = dma.done [#allocation3], 32
    $region17: #{tpu_custom_call.1} parent=1 // pred_fallthru
      _
    // Predicated region
    $region18: #{tpu_custom_call.1} parent=1 // pred_check
      _
    $region19: #{tpu_custom_call.1} parent=1 // pred_check_branch
      %52 = sbr.rel (0) target = $region21
    $region20: #{tpu_custom_call.1} parent=1 // pred_region
      %54 = dma.done [#allocation5], 7296
    $region21: #{tpu_custom_call.1} parent=1 // pred_fallthru
      _
    // Predicated region
    $region22: #{tpu_custom_call.1} parent=1 // pred_check
      _
    $region23: #{tpu_custom_call.1} parent=1 // pred_check_branch
      %56 = sbr.rel (0) target = $region25
    $region24: #{tpu_custom_call.1} parent=1 // pred_region
      %58 = dma.done [#allocation5], 768
    $region25: #{tpu_custom_call.1} parent=1 // pred_fallthru
      _
    %v60 = vld [vmem:[#allocation4] sm:$0xf]
    %v61 = vld [vmem:[#allocation4 + $0x4] sm:$0xf]
    %v62 = vld [vmem:[#allocation4 + $0x8] sm:$0xf]
    %v63 = vld [vmem:[#allocation4 + $0xc] sm:$0xf]
    %v64 = vld [vmem:[#allocation4 + $0x10] sm:$0xf]
    %v65 = vld [vmem:[#allocation4 + $0x14] sm:$0xf]
    %v66 = vld [vmem:[#allocation4 + $0x18] sm:$0xf]
    %v67 = vld [vmem:[#allocation4 + $0x1c] sm:$0xf]
    %v68 = vld [vmem:[#allocation4 + $0x20] sm:$0xf]
    %v69 = vld [vmem:[#allocation4 + $0x24] sm:$0xf]
    %v70 = vld [vmem:[#allocation4 + $0x28] sm:$0xf]
    %v71 = vld [vmem:[#allocation4 + $0x2c] sm:$0xf]
    %v72 = vld [vmem:[#allocation4 + $0x30] sm:$0xf]
    %v73 = vld [vmem:[#allocation4 + $0x34] sm:$0xf]
    %v74 = vld [vmem:[#allocation4 + $0x38] sm:$0xf]
    %v75 = vld [vmem:[#allocation4 + $0x3c] sm:$0xf]
    %v76 = vld [vmem:[#allocation4 + $0x40] sm:$0xf]
    %v77 = vld [vmem:[#allocation4 + $0x44] sm:$0xf]
    %v78 = vld [vmem:[#allocation4 + $0x48] sm:$0xf]
    %v79 = vld [vmem:[#allocation4 + $0x4c] sm:$0xf]
    %v80 = vld [vmem:[#allocation4 + $0x50] sm:$0xf]
    %v81 = vld [vmem:[#allocation4 + $0x54] sm:$0xf]
    %v82 = vld [vmem:[#allocation4 + $0x58] sm:$0xf]
    %v83 = vld [vmem:[#allocation4 + $0x5c] sm:$0xf]
    %v84 = vld [vmem:[#allocation4 + $0x60] sm:$0xf]
    %v85 = vld [vmem:[#allocation4 + $0x64] sm:$0xf]
    %v86 = vld [vmem:[#allocation4 + $0x68] sm:$0xf]
    %v87 = vld [vmem:[#allocation4 + $0x6c] sm:$0xf]
    %v88 = vld [vmem:[#allocation4 + $0x70] sm:$0xf]
    %v89 = vld [vmem:[#allocation4 + $0x74] sm:$0xf]
    %v90 = vld [vmem:[#allocation4 + $0x78] sm:$0xf]
    %v91 = vld [vmem:[#allocation4 + $0x7c] sm:$0xf]
    %v92 = vld [vmem:[#allocation4 + $0x80] sm:$0xf]
    %v93 = vld [vmem:[#allocation4 + $0x84] sm:$0xf]
    %v94 = vld [vmem:[#allocation4 + $0x88] sm:$0xf]
    %v95 = vld [vmem:[#allocation4 + $0x8c] sm:$0xf]
    %v96 = vld [vmem:[#allocation4 + $0x90] sm:$0xf]
    %v97 = vld [vmem:[#allocation4 + $0x94] sm:$0xf]
    %v98 = vld [vmem:[#allocation4 + $0x98] sm:$0xf]
    %v99 = vld [vmem:[#allocation4 + $0x9c] sm:$0xf]
    %v100 = vld [vmem:[#allocation4 + $0xa0] sm:$0xf]
    %v101 = vld [vmem:[#allocation4 + $0xa4] sm:$0xf]
    %v102 = vld [vmem:[#allocation4 + $0xa8] sm:$0xf]
    %v103 = vld [vmem:[#allocation4 + $0xac] sm:$0xf]
    %v104 = vld [vmem:[#allocation4 + $0xb0] sm:$0xf]
    %v105 = vld [vmem:[#allocation4 + $0xb4] sm:$0xf]
    %v106 = vld [vmem:[#allocation4 + $0xb8] sm:$0xf]
    %v107 = vld [vmem:[#allocation4 + $0xbc] sm:$0xf]
    %v108 = vld [vmem:[#allocation4 + $0xc0] sm:$0xf]
    %v109 = vld [vmem:[#allocation4 + $0xc4] sm:$0xf]
    %v110 = vld [vmem:[#allocation4 + $0xc8] sm:$0xf]
    %v111 = vld [vmem:[#allocation4 + $0xcc] sm:$0xf]
    %v112 = vld [vmem:[#allocation4 + $0xd0] sm:$0xf]
    %v113 = vld [vmem:[#allocation4 + $0xd4] sm:$0xf]
    %v114 = vld [vmem:[#allocation4 + $0xd8] sm:$0xf]
    %v115 = vld [vmem:[#allocation4 + $0xdc] sm:$0xf]
    %v116 = vld [vmem:[#allocation4 + $0xe0] sm:$0xf]
    %v117 = vld [vmem:[#allocation4 + $0xe4] sm:$0xf]
    %v118 = vld [vmem:[#allocation4 + $0xe8] sm:$0xf]
    %v119 = vld [vmem:[#allocation4 + $0xec] sm:$0xf]
    %v120 = vld [vmem:[#allocation4 + $0xf0] sm:$0xf]
    %v121 = vld [vmem:[#allocation4 + $0xf4] sm:$0xf]
    %v122 = vld [vmem:[#allocation4 + $0xf8] sm:$0xf]
    %v123 = vld [vmem:[#allocation4 + $0xfc] sm:$0xf]
    %v124 = vld [vmem:[#allocation4 + $0x100] sm:$0xf]
    %v125 = vld [vmem:[#allocation4 + $0x104] sm:$0xf]
    %v126 = vld [vmem:[#allocation4 + $0x108] sm:$0xf]
    %v127 = vld [vmem:[#allocation4 + $0x10c] sm:$0xf]
    %v128 = vld [vmem:[#allocation4 + $0x110] sm:$0xf]
    %v129 = vld [vmem:[#allocation4 + $0x114] sm:$0xf]
    %v130 = vld [vmem:[#allocation4 + $0x118] sm:$0xf]
    %v131 = vld [vmem:[#allocation4 + $0x11c] sm:$0xf]
    %v132 = vld [vmem:[#allocation4 + $0x120] sm:$0xf]
    %v133 = vld [vmem:[#allocation4 + $0x124] sm:$0xf]
    %v134 = vld [vmem:[#allocation4 + $0x128] sm:$0xf]
    %v135 = vld [vmem:[#allocation4 + $0x12c] sm:$0xf]
    %v136 = vld [vmem:[#allocation4 + $0x130] sm:$0xf]
    %v137 = vld [vmem:[#allocation4 + $0x134] sm:$0xf]
    %v138 = vld [vmem:[#allocation4 + $0x138] sm:$0xf]
    %v139 = vld [vmem:[#allocation4 + $0x13c] sm:$0xf]
    %v140 = vld [vmem:[#allocation4 + $0x140] sm:$0xf]
    %v141 = vld [vmem:[#allocation4 + $0x144] sm:$0xf]
    %v142 = vld [vmem:[#allocation4 + $0x148] sm:$0xf]
    %v143 = vld [vmem:[#allocation4 + $0x14c] sm:$0xf]
    %v144 = vld [vmem:[#allocation4 + $0x150] sm:$0xf]
    %v145 = vld [vmem:[#allocation4 + $0x154] sm:$0xf]
    %v146 = vld [vmem:[#allocation4 + $0x158] sm:$0xf]
    %v147 = vld [vmem:[#allocation4 + $0x15c] sm:$0xf]
    %v148 = vld [vmem:[#allocation4 + $0x160] sm:$0xf]
    %v149 = vld [vmem:[#allocation4 + $0x164] sm:$0xf]
    %v150 = vld [vmem:[#allocation4 + $0x168] sm:$0xf]
    %v151 = vld [vmem:[#allocation4 + $0x16c] sm:$0xf]
    %v152 = vld [vmem:[#allocation4 + $0x170] sm:$0xf]
    %v153 = vld [vmem:[#allocation4 + $0x174] sm:$0xf]
    %v154 = vld [vmem:[#allocation4 + $0x178] sm:$0xf]
    %v155 = vld [vmem:[#allocation4 + $0x17c] sm:$0xf]
    %v156 = vld [vmem:[#allocation4 + $0x180] sm:$0xf]
    %v157 = vld [vmem:[#allocation4 + $0x184] sm:$0xf]
    %v158 = vld [vmem:[#allocation4 + $0x188] sm:$0xf]
    %v159 = vld [vmem:[#allocation4 + $0x18c] sm:$0xf]
    %v160 = vld [vmem:[#allocation4 + $0x190] sm:$0xf]
    %v161 = vld [vmem:[#allocation4 + $0x194] sm:$0xf]
    %v162 = vld [vmem:[#allocation4 + $0x198] sm:$0xf]
    %v163 = vld [vmem:[#allocation4 + $0x19c] sm:$0xf]
    %v164 = vld [vmem:[#allocation4 + $0x1a0] sm:$0xf]
    %v165 = vld [vmem:[#allocation4 + $0x1a4] sm:$0xf]
    %v166 = vld [vmem:[#allocation4 + $0x1a8] sm:$0xf]
    %v167 = vld [vmem:[#allocation4 + $0x1ac] sm:$0xf]
    %v168 = vld [vmem:[#allocation4 + $0x1b0] sm:$0xf]
    %v169 = vld [vmem:[#allocation4 + $0x1b4] sm:$0xf]
    %v170 = vld [vmem:[#allocation4 + $0x1b8] sm:$0xf]
    %v171 = vld [vmem:[#allocation4 + $0x1bc] sm:$0xf]
    %v172 = vld [vmem:[#allocation4 + $0x1c0] sm:$0xf]
    %v173 = vld [vmem:[#allocation4 + $0x1c4] sm:$0xf]
    %v174 = vld [vmem:[#allocation6] sm:$0x1]
    %v175 = vld [vmem:[#allocation6 + $0x1] sm:$0x1]
    %v176 = vld [vmem:[#allocation6 + $0x2] sm:$0x1]
    %v177 = vld [vmem:[#allocation6 + $0x3] sm:$0x1]
    %v178 = vld [vmem:[#allocation6 + $0x4] sm:$0x1]
    %v179 = vld [vmem:[#allocation6 + $0x8] sm:$0xff]
    %v180 = vld [vmem:[#allocation6 + $0x10] sm:$0xff]
    %v181 = vld [vmem:[#allocation6 + $0x18] sm:$0xff]
    %v182 = vld [vmem:[#allocation6 + $0x20] sm:$0xff]
    %v183 = vld [vmem:[#allocation6 + $0x28] sm:$0xff]
    %v184 = vld [vmem:[#allocation2] sm:$0x3]
    %v185 = vpack.c.bf16 %v184, %v184
    %v186 = vperm.slane %v174, 0
    %v189 = vunpack.c.l.b16 %v60
    %v190 = vunpack.c.l.b16 %v61
    %v191 = vpack.c.b16 %v190, %v189
    %vm193 = vcmask 130048
    %v195 = vsel %vm193, %v185, 0
    %197 = vmatpush.bf16.msra.mxu0 0
    %198 = vmatpush.bf16.msra.mxu0 0
    %199 = vmatpush.bf16.msra.mxu0 0
    %200 = vmatpush.bf16.msra.mxu0 0
    %201 = vmatpush.bf16.msra.mxu0 0
    %202 = vmatpush.bf16.msra.mxu0 0
    %203 = vmatpush.bf16.msra.mxu0 0
    %204 = vmatpush.bf16.msra.mxu0 %v191
    %205 = vmatmul.bf16.gmra.mxu0 %v195
    %v206 = vpop.f32.mrf.mxu0
    %v207 = vadd.f32 %v186, %v206
    %v208 = vpop.f32.mrf.mxu0
    %209 = vdwg.mxu0
    %v210 = vmax.f32 %v207, 0.0
    %v211 = vpack.c.bf16 %v210, %v210
    %v212 = vperm.slane %v175, 0
    %v229 = vunpack.c.l.b16 %v62
    %v230 = vunpack.c.l.b16 %v63
    %v231 = vunpack.c.l.b16 %v64
    %v232 = vunpack.c.l.b16 %v65
    %v233 = vunpack.c.l.b16 %v66
    %v234 = vunpack.c.l.b16 %v67
    %v235 = vunpack.c.l.b16 %v68
    %v236 = vunpack.c.l.b16 %v69
    %v237 = vunpack.c.l.b16 %v70
    %v238 = vunpack.c.l.b16 %v71
    %v239 = vunpack.c.l.b16 %v72
    %v240 = vunpack.c.l.b16 %v73
    %v241 = vunpack.c.l.b16 %v74
    %v242 = vunpack.c.l.b16 %v75
    %v243 = vunpack.c.l.b16 %v76
    %v244 = vunpack.c.l.b16 %v77
    %v245 = vpack.c.b16 %v230, %v229
    %v246 = vpack.c.b16 %v232, %v231
    %v247 = vpack.c.b16 %v234, %v233
    %v248 = vpack.c.b16 %v236, %v235
    %v249 = vpack.c.b16 %v238, %v237
    %v250 = vpack.c.b16 %v240, %v239
    %v251 = vpack.c.b16 %v242, %v241
    %v252 = vpack.c.b16 %v244, %v243
    %261 = vmatpush.bf16.msra.mxu0 %v252
    %262 = vmatpush.bf16.msra.mxu0 %v251
    %263 = vmatpush.bf16.msra.mxu0 %v250
    %264 = vmatpush.bf16.msra.mxu0 %v249
    %265 = vmatpush.bf16.msra.mxu0 %v248
    %266 = vmatpush.bf16.msra.mxu0 %v247
    %267 = vmatpush.bf16.msra.mxu0 %v246
    %268 = vmatpush.bf16.msra.mxu0 %v245
    %269 = vmatmul.bf16.gmra.mxu0 %v211
    %v270 = vpop.f32.mrf.mxu0
    %v271 = vadd.f32 %v212, %v270
    %v272 = vpop.f32.mrf.mxu0
    %273 = vdwg.mxu0
    %v274 = vperm.slane %v271, 0
    %v275 = vadd.f32 %v274, %v179
    %v276 = vperm.slane %v271, 1
    %v277 = vadd.f32 %v276, %v179
    %v278 = vrot.slane %v275, 6
    %v279 = vrot.slane %v277, 6
    %v280 = vlaneseq
    %v281 = vshrl.u32 %v280, 7
    %vm282 = vcmp.lt.s32.totalorder %v281, 2
    %v283 = vsel %vm282, %v278, %v279
    %v284 = vsel %vm282, %v279, %v278
    %v285 = vmul.f32 %v284, %v182
    %v286 = vmul.f32 %v283, %v183
    %v287 = vrot.slane %v275, 7
    %v288 = vrot.slane %v277, 7
    %vm289 = vcmp.lt.s32.totalorder %v281, 1
    %v290 = vsel %vm289, %v287, %v288
    %v291 = vsel %vm289, %v288, %v287
    %v292 = vmul.f32 %v291, %v180
    %v293 = vmul.f32 %v290, %v181
    %v294 = vpack.c.bf16 %v286, %v285
    %v295 = vpack.c.bf16 %v293, %v292
    %v296 = vpack.c.bf16 %v277, %v275
    %v297 = vperm.slane %v176, 0
    %v346 = vunpack.c.l.b16 %v78
    %v347 = vunpack.c.l.b16 %v79
    %v348 = vunpack.c.l.b16 %v80
    %v349 = vunpack.c.l.b16 %v81
    %v350 = vunpack.c.l.b16 %v82
    %v351 = vunpack.c.l.b16 %v83
    %v352 = vunpack.c.l.b16 %v84
    %v353 = vunpack.c.l.b16 %v85
    %v354 = vunpack.c.l.b16 %v86
    %v355 = vunpack.c.l.b16 %v87
    %v356 = vunpack.c.l.b16 %v88
    %v357 = vunpack.c.l.b16 %v89
    %v358 = vunpack.c.l.b16 %v90
    %v359 = vunpack.c.l.b16 %v91
    %v360 = vunpack.c.l.b16 %v92
    %v361 = vunpack.c.l.b16 %v93
    %v362 = vunpack.c.l.b16 %v94
    %v363 = vunpack.c.l.b16 %v95
    %v364 = vunpack.c.l.b16 %v96
    %v365 = vunpack.c.l.b16 %v97
    %v366 = vunpack.c.l.b16 %v98
    %v367 = vunpack.c.l.b16 %v99
    %v368 = vunpack.c.l.b16 %v100
    %v369 = vunpack.c.l.b16 %v101
    %v370 = vunpack.c.l.b16 %v102
    %v371 = vunpack.c.l.b16 %v103
    %v372 = vunpack.c.l.b16 %v104
    %v373 = vunpack.c.l.b16 %v105
    %v374 = vunpack.c.l.b16 %v106
    %v375 = vunpack.c.l.b16 %v107
    %v376 = vunpack.c.l.b16 %v108
    %v377 = vunpack.c.l.b16 %v109
    %v378 = vunpack.c.l.b16 %v110
    %v379 = vunpack.c.l.b16 %v111
    %v380 = vunpack.c.l.b16 %v112
    %v381 = vunpack.c.l.b16 %v113
    %v382 = vunpack.c.l.b16 %v114
    %v383 = vunpack.c.l.b16 %v115
    %v384 = vunpack.c.l.b16 %v116
    %v385 = vunpack.c.l.b16 %v117
    %v386 = vunpack.c.l.b16 %v118
    %v387 = vunpack.c.l.b16 %v119
    %v388 = vunpack.c.l.b16 %v120
    %v389 = vunpack.c.l.b16 %v121
    %v390 = vunpack.c.l.b16 %v122
    %v391 = vunpack.c.l.b16 %v123
    %v392 = vunpack.c.l.b16 %v124
    %v393 = vunpack.c.l.b16 %v125
    %v394 = vpack.c.b16 %v347, %v346
    %v395 = vpack.c.b16 %v349, %v348
    %v396 = vpack.c.b16 %v351, %v350
    %v397 = vpack.c.b16 %v353, %v352
    %v398 = vpack.c.b16 %v355, %v354
    %v399 = vpack.c.b16 %v357, %v356
    %v400 = vpack.c.b16 %v359, %v358
    %v401 = vpack.c.b16 %v361, %v360
    %v402 = vpack.c.b16 %v363, %v362
    %v403 = vpack.c.b16 %v365, %v364
    %v404 = vpack.c.b16 %v367, %v366
    %v405 = vpack.c.b16 %v369, %v368
    %v406 = vpack.c.b16 %v371, %v370
    %v407 = vpack.c.b16 %v373, %v372
    %v408 = vpack.c.b16 %v375, %v374
    %v409 = vpack.c.b16 %v377, %v376
    %v410 = vpack.c.b16 %v379, %v378
    %v411 = vpack.c.b16 %v381, %v380
    %v412 = vpack.c.b16 %v383, %v382
    %v413 = vpack.c.b16 %v385, %v384
    %v414 = vpack.c.b16 %v387, %v386
    %v415 = vpack.c.b16 %v389, %v388
    %v416 = vpack.c.b16 %v391, %v390
    %v417 = vpack.c.b16 %v393, %v392
    %442 = vmatpush.bf16.msra.mxu0 %v401
    %443 = vmatpush.bf16.msra.mxu0 %v400
    %444 = vmatpush.bf16.msra.mxu0 %v399
    %445 = vmatpush.bf16.msra.mxu0 %v398
    %446 = vmatpush.bf16.msra.mxu0 %v397
    %447 = vmatpush.bf16.msra.mxu0 %v396
    %448 = vmatpush.bf16.msra.mxu0 %v395
    %449 = vmatpush.bf16.msra.mxu0 %v394
    %450 = vmatmul.bf16.gmra.mxu0 %v294
    %v451 = vpop.f32.mrf.mxu0
    %v452 = vadd.f32 %v297, %v451
    %v453 = vpop.f32.mrf.mxu0
    %v454 = vadd.f32 %v297, %v453
    %455 = vdwg.mxu0
    %456 = vmatpush.bf16.msra.mxu0 %v409
    %457 = vmatpush.bf16.msra.mxu0 %v408
    %458 = vmatpush.bf16.msra.mxu0 %v407
    %459 = vmatpush.bf16.msra.mxu0 %v406
    %460 = vmatpush.bf16.msra.mxu0 %v405
    %461 = vmatpush.bf16.msra.mxu0 %v404
    %462 = vmatpush.bf16.msra.mxu0 %v403
    %463 = vmatpush.bf16.msra.mxu0 %v402
    %464 = vmatmul.bf16.gmra.mxu0 %v295
    %v465 = vpop.f32.mrf.mxu0
    %v466 = vadd.f32 %v452, %v465
    %v467 = vpop.f32.mrf.mxu0
    %v468 = vadd.f32 %v454, %v467
    %469 = vdwg.mxu0
    %470 = vmatpush.bf16.msra.mxu0 %v417
    %471 = vmatpush.bf16.msra.mxu0 %v416
    %472 = vmatpush.bf16.msra.mxu0 %v415
    %473 = vmatpush.bf16.msra.mxu0 %v414
    %474 = vmatpush.bf16.msra.mxu0 %v413
    %475 = vmatpush.bf16.msra.mxu0 %v412
    %476 = vmatpush.bf16.msra.mxu0 %v411
    %477 = vmatpush.bf16.msra.mxu0 %v410
    %478 = vmatmul.bf16.gmra.mxu0 %v296
    %v479 = vpop.f32.mrf.mxu0
    %v480 = vadd.f32 %v466, %v479
    %v481 = vpop.f32.mrf.mxu0
    %v482 = vadd.f32 %v468, %v481
    %483 = vdwg.mxu0
    %v484 = vmax.f32 %v480, 0.0
    %v485 = vmax.f32 %v482, 0.0
    %v486 = vrot.slane %v484, 6
    %v487 = vrot.slane %v485, 6
    %v488 = vsel %vm282, %v486, %v487
    %v489 = vsel %vm282, %v487, %v486
    %v490 = vmul.f32 %v489, %v182
    %v491 = vmul.f32 %v488, %v183
    %v492 = vrot.slane %v484, 7
    %v493 = vrot.slane %v485, 7
    %v494 = vsel %vm289, %v492, %v493
    %v495 = vsel %vm289, %v493, %v492
    %v496 = vmul.f32 %v495, %v180
    %v497 = vmul.f32 %v494, %v181
    %v498 = vpack.c.bf16 %v491, %v490
    %v499 = vpack.c.bf16 %v497, %v496
    %v500 = vpack.c.bf16 %v485, %v484
    %v501 = vperm.slane %v177, 0
    %v550 = vunpack.c.l.b16 %v126
    %v551 = vunpack.c.l.b16 %v127
    %v552 = vunpack.c.l.b16 %v128
    %v553 = vunpack.c.l.b16 %v129
    %v554 = vunpack.c.l.b16 %v130
    %v555 = vunpack.c.l.b16 %v131
    %v556 = vunpack.c.l.b16 %v132
    %v557 = vunpack.c.l.b16 %v133
    %v558 = vunpack.c.l.b16 %v134
    %v559 = vunpack.c.l.b16 %v135
    %v560 = vunpack.c.l.b16 %v136
    %v561 = vunpack.c.l.b16 %v137
    %v562 = vunpack.c.l.b16 %v138
    %v563 = vunpack.c.l.b16 %v139
    %v564 = vunpack.c.l.b16 %v140
    %v565 = vunpack.c.l.b16 %v141
    %v566 = vunpack.c.l.b16 %v142
    %v567 = vunpack.c.l.b16 %v143
    %v568 = vunpack.c.l.b16 %v144
    %v569 = vunpack.c.l.b16 %v145
    %v570 = vunpack.c.l.b16 %v146
    %v571 = vunpack.c.l.b16 %v147
    %v572 = vunpack.c.l.b16 %v148
    %v573 = vunpack.c.l.b16 %v149
    %v574 = vunpack.c.l.b16 %v150
    %v575 = vunpack.c.l.b16 %v151
    %v576 = vunpack.c.l.b16 %v152
    %v577 = vunpack.c.l.b16 %v153
    %v578 = vunpack.c.l.b16 %v154
    %v579 = vunpack.c.l.b16 %v155
    %v580 = vunpack.c.l.b16 %v156
    %v581 = vunpack.c.l.b16 %v157
    %v582 = vunpack.c.l.b16 %v158
    %v583 = vunpack.c.l.b16 %v159
    %v584 = vunpack.c.l.b16 %v160
    %v585 = vunpack.c.l.b16 %v161
    %v586 = vunpack.c.l.b16 %v162
    %v587 = vunpack.c.l.b16 %v163
    %v588 = vunpack.c.l.b16 %v164
    %v589 = vunpack.c.l.b16 %v165
    %v590 = vunpack.c.l.b16 %v166
    %v591 = vunpack.c.l.b16 %v167
    %v592 = vunpack.c.l.b16 %v168
    %v593 = vunpack.c.l.b16 %v169
    %v594 = vunpack.c.l.b16 %v170
    %v595 = vunpack.c.l.b16 %v171
    %v596 = vunpack.c.l.b16 %v172
    %v597 = vunpack.c.l.b16 %v173
    %v598 = vpack.c.b16 %v551, %v550
    %v599 = vpack.c.b16 %v553, %v552
    %v600 = vpack.c.b16 %v555, %v554
    %v601 = vpack.c.b16 %v557, %v556
    %v602 = vpack.c.b16 %v559, %v558
    %v603 = vpack.c.b16 %v561, %v560
    %v604 = vpack.c.b16 %v563, %v562
    %v605 = vpack.c.b16 %v565, %v564
    %v606 = vpack.c.b16 %v567, %v566
    %v607 = vpack.c.b16 %v569, %v568
    %v608 = vpack.c.b16 %v571, %v570
    %v609 = vpack.c.b16 %v573, %v572
    %v610 = vpack.c.b16 %v575, %v574
    %v611 = vpack.c.b16 %v577, %v576
    %v612 = vpack.c.b16 %v579, %v578
    %v613 = vpack.c.b16 %v581, %v580
    %v614 = vpack.c.b16 %v583, %v582
    %v615 = vpack.c.b16 %v585, %v584
    %v616 = vpack.c.b16 %v587, %v586
    %v617 = vpack.c.b16 %v589, %v588
    %v618 = vpack.c.b16 %v591, %v590
    %v619 = vpack.c.b16 %v593, %v592
    %v620 = vpack.c.b16 %v595, %v594
    %v621 = vpack.c.b16 %v597, %v596
    %646 = vmatpush.bf16.msra.mxu0 %v605
    %647 = vmatpush.bf16.msra.mxu0 %v604
    %648 = vmatpush.bf16.msra.mxu0 %v603
    %649 = vmatpush.bf16.msra.mxu0 %v602
    %650 = vmatpush.bf16.msra.mxu0 %v601
    %651 = vmatpush.bf16.msra.mxu0 %v600
    %652 = vmatpush.bf16.msra.mxu0 %v599
    %653 = vmatpush.bf16.msra.mxu0 %v598
    %654 = vmatmul.bf16.gmra.mxu0 %v498
    %v655 = vpop.f32.mrf.mxu0
    %v656 = vadd.f32 %v501, %v655
    %v657 = vpop.f32.mrf.mxu0
    %v658 = vadd.f32 %v501, %v657
    %659 = vdwg.mxu0
    %660 = vmatpush.bf16.msra.mxu0 %v613
    %661 = vmatpush.bf16.msra.mxu0 %v612
    %662 = vmatpush.bf16.msra.mxu0 %v611
    %663 = vmatpush.bf16.msra.mxu0 %v610
    %664 = vmatpush.bf16.msra.mxu0 %v609
    %665 = vmatpush.bf16.msra.mxu0 %v608
    %666 = vmatpush.bf16.msra.mxu0 %v607
    %667 = vmatpush.bf16.msra.mxu0 %v606
    %668 = vmatmul.bf16.gmra.mxu0 %v499
    %v669 = vpop.f32.mrf.mxu0
    %v670 = vadd.f32 %v656, %v669
    %v671 = vpop.f32.mrf.mxu0
    %v672 = vadd.f32 %v658, %v671
    %673 = vdwg.mxu0
    %674 = vmatpush.bf16.msra.mxu0 %v621
    %675 = vmatpush.bf16.msra.mxu0 %v620
    %676 = vmatpush.bf16.msra.mxu0 %v619
    %677 = vmatpush.bf16.msra.mxu0 %v618
    %678 = vmatpush.bf16.msra.mxu0 %v617
    %679 = vmatpush.bf16.msra.mxu0 %v616
    %680 = vmatpush.bf16.msra.mxu0 %v615
    %681 = vmatpush.bf16.msra.mxu0 %v614
    %682 = vmatmul.bf16.gmra.mxu0 %v500
    %v683 = vpop.f32.mrf.mxu0
    %v684 = vadd.f32 %v670, %v683
    %v685 = vpop.f32.mrf.mxu0
    %v686 = vadd.f32 %v672, %v685
    %687 = vdwg.mxu0
    %v688 = vmax.f32 %v684, 0.0
    %v689 = vmax.f32 %v686, 0.0
    %v690 = vld [vmem:[#allocation6 + $0x5] sm:$0x1]
    %v691 = vrot.slane %v688, 6
    %v692 = vrot.slane %v689, 6
    %v693 = vsel %vm282, %v691, %v692
    %v694 = vsel %vm282, %v692, %v691
    %v695 = vmul.f32 %v694, %v182
    %v696 = vmul.f32 %v693, %v183
    %v697 = vperm.slane %v690, 0
    %v698 = vmul.f32 %v695, %v697
    %v699 = vmul.f32 %v696, %v697
    %v700 = vadd.f32 %v698, 0.0
    %v701 = vadd.f32 %v699, 0.0
    %v702 = vld [vmem:[#allocation6 + $0x6] sm:$0x1]
    %v703 = vrot.slane %v688, 7
    %v704 = vrot.slane %v689, 7
    %v705 = vsel %vm289, %v703, %v704
    %v706 = vsel %vm289, %v704, %v703
    %v707 = vmul.f32 %v706, %v180
    %v708 = vmul.f32 %v705, %v181
    %v709 = vperm.slane %v702, 0
    %v710 = vmul.f32 %v707, %v709
    %v711 = vmul.f32 %v708, %v709
    %v712 = vadd.f32 %v700, %v710
    %v713 = vadd.f32 %v701, %v711
    %v714 = vld [vmem:[#allocation6 + $0x7] sm:$0x1]
    %v715 = vperm.slane %v714, 0
    %v716 = vmul.f32 %v688, %v715
    %v717 = vmul.f32 %v689, %v715
    %v718 = vadd.f32 %v712, %v716
    %v719 = vadd.f32 %v713, %v717
    %720 = vadd.xlane.f32.xlu0 %v718
    %v721 = vpop.xlane.xlu0 %720
    %722 = vadd.xlane.f32.xlu0 %v719
    %v723 = vpop.xlane.xlu0 %722
    %v724 = vperm.slane %v178, 0
    %v725 = vadd.f32 %v721, %v724
    %v726 = vadd.f32 %v723, %v724
    %vm727 = vcmask 7168
    %728 = vst.msk [vmem:[%s3] sm:$0xff] %vm727, %v725
    %729 = vst.msk [vmem:[%s3 + $0x8] sm:$0xff] %vm727, %v726
    // Predicated region
    $region26: #{tpu_custom_call.1} parent=1 // pred_check
      _
    $region27: #{tpu_custom_call.1} parent=1 // pred_check_branch
      %731 = sbr.rel (0) target = $region29
    $region28: #{tpu_custom_call.1} parent=1 // pred_region
      _
    $region29: #{tpu_custom_call.1} parent=1 // pred_fallthru
      _
    // Predicated region
    $region30: #{tpu_custom_call.1} parent=1 // pred_check
      _
    $region31: #{tpu_custom_call.1} parent=1 // pred_check_branch
      %733 = sbr.rel (0) target = $region33
    $region32: #{tpu_custom_call.1} parent=1 // pred_region
      _
    $region33: #{tpu_custom_call.1} parent=1 // pred_fallthru
      _
    %734 = vsyncpa [#allocation3], 1
    %735 = vsyncpa [#allocation5], 1

</llo_original>
